<compile_context>
chip_gen: v7x
topology: tpu7x:2x2x1
jax: 0.10.0
libtpu: 0.0.40
codegen_flags: <defaults>
</compile_context>

<pallas_src>
import functools

import jax
import jax.numpy as jnp
from jax import lax
from jax.experimental import pallas as pl
from jax.experimental.pallas import tpu as pltpu

LN_EPS = 1e-5  # PyTorch nn.LayerNorm default


def _round_up(x, m):
    return ((x + m - 1) // m) * m


def _choose_tm(M, Kp, Dp, vmem_budget=24 * 1024 * 1024):
    """Largest row tile (multiple of 8, <= 1024) whose pipelined buffers fit VMEM.

    Budget: double-buffered bf16 patch tile + double-buffered f32 output tile
    + resident bf16 weight + tiny scale table, with headroom under the 32 MiB
    scoped-VMEM limit."""
    tm = min(1024, _round_up(M, 8))

    def fits(t):
        return (2 * t * Kp * 2 + 2 * t * Dp * 4 + Kp * Dp * 2 + 3 * Dp * 4
                ) <= vmem_budget

    while tm > 8 and not fits(tm):
        tm = max(8, _round_up(tm // 2, 8))
    return tm


def _patch_embed_kernel(p_ref, w_ref, s_ref, o_ref, *, d_real):
    # p_ref: (tm, Kp) bf16 patches tile
    # w_ref: (Kp, Dp) bf16 flattened conv weight (zero-padded, resident)
    # s_ref: (3, Dp)  f32  rows = [conv_bias, ln_gamma, ln_beta] (zero-padded)
    # o_ref: (tm, Dp) f32  output tile (padded channels come out as 0)
    dp = o_ref.shape[-1]

    y = jnp.dot(p_ref[...], w_ref[...], preferred_element_type=jnp.float32)
    y = y + s_ref[0:1, :]                                   # conv bias

    # Padded channels (d >= d_real) have zero weight and zero bias -> y == 0
    # there, so a plain sum over Dp equals the sum over the real channels.
    inv_d = jnp.float32(1.0 / d_real)
    mean = jnp.sum(y, axis=-1, keepdims=True) * inv_d
    centered = y - mean
    if d_real == dp:
        # No channel padding: skip the mask (no extra VALU work).
        var = jnp.sum(centered * centered, axis=-1, keepdims=True) * inv_d
    else:
        # Padded columns of `centered` equal -mean; mask them out of the var.
        lane = lax.broadcasted_iota(jnp.int32, y.shape, 1)
        mask = (lane < d_real).astype(jnp.float32)
        var = jnp.sum(centered * centered * mask, axis=-1, keepdims=True) * inv_d
    inv = lax.rsqrt(var + LN_EPS)
    normed = centered * inv
    # gamma/beta are zero on padded channels -> padded output columns are 0.
    o_ref[...] = (normed * s_ref[1:2, :] + s_ref[2:3, :]).astype(o_ref.dtype)


def _im2col_bf16(x, patch_size, stride, pad, k_pad):
    """x: (B, C, H, W) NCHW -> patches (B*Ho*Wo, K + k_pad) in bf16, plus (Ho, Wo).

    Inner patch ordering is (kh, kw, c) with c fastest (matches the weight
    flattening below).  The trailing K padding is emitted directly inside the
    concat so no extra HBM pad pass over the patches is needed."""
    B, C, H, W = x.shape
    Ho = (H + 2 * pad - patch_size) // stride + 1
    Wo = (W + 2 * pad - patch_size) // stride + 1
    x_nhwc = jnp.transpose(x, (0, 2, 3, 1)).astype(jnp.bfloat16)   # (B, H, W, C)
    x_pad = jnp.pad(x_nhwc, ((0, 0), (pad, pad), (pad, pad), (0, 0)))
    cols = []
    for kh in range(patch_size):
        for kw in range(patch_size):
            sl = lax.slice(
                x_pad,
                (0, kh, kw, 0),
                (B, kh + (Ho - 1) * stride + 1, kw + (Wo - 1) * stride + 1, C),
                (1, stride, stride, 1),
            )                                                # (B, Ho, Wo, C)
            cols.append(sl)
    if k_pad > 0:
        cols.append(jnp.zeros((B, Ho, Wo, k_pad), jnp.bfloat16))
    patches = jnp.concatenate(cols, axis=-1)                 # (B, Ho, Wo, Kp)
    Kp = patch_size * patch_size * C + k_pad
    return patches.reshape(B * Ho * Wo, Kp), Ho, Wo


@functools.partial(jax.jit, static_argnames=("patch_size", "stride"))
def overlap_patch_embed(x, conv_w, conv_b, ln_gamma, ln_beta, *, patch_size, stride):
    """x: (B, C, H, W) NCHW (PyTorch convention). Returns ((B, Ho*Wo, D), Ho, Wo)."""
    B, C = x.shape[0], x.shape[1]
    D = conv_w.shape[0]
    pad = patch_size // 2

    K = patch_size * patch_size * C
    Kp = _round_up(K, 128)
    Dp = _round_up(D, 128)

    # TODO(synk): im2col is still materialized in HBM (single bf16 layout pass);
    # a fully fused implicit-GEMM variant would DMA x slabs directly in-kernel.
    patches, Ho, Wo = _im2col_bf16(x, patch_size, stride, pad, Kp - K)  # (M, Kp)
    M = patches.shape[0]

    tm = _choose_tm(M, Kp, Dp)
    Mp = _round_up(M, tm)
    if Mp != M:
        patches = jnp.pad(patches, ((0, Mp - M), (0, 0)))

    # Conv2d weight (out, in, kh, kw) -> (kh, kw, c, out) -> (K, D), bf16, padded.
    w_flat = jnp.transpose(conv_w, (2, 3, 1, 0)).reshape(K, D).astype(jnp.bfloat16)
    w_p = jnp.pad(w_flat, ((0, Kp - K), (0, Dp - D)))

    # Merge bias / gamma / beta into one (3, Dp) f32 input (padded with zeros).
    scale = jnp.stack(
        [
            jnp.pad(conv_b.astype(jnp.float32), (0, Dp - D)),
            jnp.pad(ln_gamma.astype(jnp.float32), (0, Dp - D)),
            jnp.pad(ln_beta.astype(jnp.float32), (0, Dp - D)),
        ],
        axis=0,
    )

    grid = (Mp // tm,)
    cost = pl.CostEstimate(
        flops=2 * Mp * Kp * Dp,
        transcendentals=0,
        bytes_accessed=Mp * Kp * 2 + Kp * Dp * 2 + Mp * Dp * 4 + 3 * Dp * 4,
    )

    out = pl.pallas_call(
        functools.partial(_patch_embed_kernel, d_real=D),
        out_shape=jax.ShapeDtypeStruct((Mp, Dp), jnp.float32),
        grid_spec=pltpu.PrefetchScalarGridSpec(
            num_scalar_prefetch=0,
            grid=grid,
            in_specs=[
                pl.BlockSpec((tm, Kp), lambda i: (i, 0)),   # patches tile (bf16)
                pl.BlockSpec((Kp, Dp), lambda i: (0, 0)),   # conv weight (resident)
                pl.BlockSpec((3, Dp), lambda i: (0, 0)),    # bias/gamma/beta (resident)
            ],
            out_specs=pl.BlockSpec((tm, Dp), lambda i: (i, 0)),
        ),
        compiler_params=pltpu.CompilerParams(
            dimension_semantics=("parallel",),
            vmem_limit_bytes=32 * 1024 * 1024,
        ),
        cost_estimate=cost,
    )(patches, w_p, scale)

    out = out[:M, :D].reshape(B, Ho * Wo, D)
    return out, Ho, Wo


def _reference(x, conv_w, conv_b, ln_gamma, ln_beta, patch_size, stride):
    pad = patch_size // 2
    y = lax.conv_general_dilated(
        x.astype(jnp.float32), conv_w.astype(jnp.float32),
        window_strides=(stride, stride),
        padding=((pad, pad), (pad, pad)),
        dimension_numbers=("NCHW", "OIHW", "NCHW"),
    ) + conv_b.reshape(1, -1, 1, 1)
    B, C, H, W = y.shape
    y = jnp.transpose(y.reshape(B, C, H * W), (0, 2, 1))      # (B, HW, C)
    mean = jnp.mean(y, axis=-1, keepdims=True)
    var = jnp.mean((y - mean) ** 2, axis=-1, keepdims=True)
    y = (y - mean) * lax.rsqrt(var + LN_EPS)
    return y * ln_gamma + ln_beta, H, W


if __name__ == "__main__":
    # Small, deterministic config: patch_size=3, stride=2, in_chans=4, embed_dim=32
    patch_size, stride = 3, 2
    B, C_in, H_in, W_in = 2, 4, 16, 16
    embed_dim = 32

    key = jax.random.PRNGKey(0)
    kx, kw, kb, kg, kbe = jax.random.split(key, 5)
    x = jax.random.normal(kx, (B, C_in, H_in, W_in), dtype=jnp.float32)
    conv_w = 0.1 * jax.random.normal(kw, (embed_dim, C_in, patch_size, patch_size), jnp.float32)
    conv_b = 0.1 * jax.random.normal(kb, (embed_dim,), jnp.float32)
    ln_gamma = jnp.ones((embed_dim,), jnp.float32) + 0.05 * jax.random.normal(kg, (embed_dim,), jnp.float32)
    ln_beta = 0.05 * jax.random.normal(kbe, (embed_dim,), jnp.float32)

    out, Ho, Wo = overlap_patch_embed(
        x, conv_w, conv_b, ln_gamma, ln_beta, patch_size=patch_size, stride=stride)
    out = jax.block_until_ready(out)

    ref, Hr, Wr = _reference(x, conv_w, conv_b, ln_gamma, ln_beta, patch_size, stride)
    assert (Ho, Wo) == (Hr, Wr)
    assert out.shape == (B, Ho * Wo, embed_dim)
    # bf16 MXU inputs (f32 accumulation + f32 LayerNorm) -> relaxed tolerance.
    assert jnp.max(jnp.abs(out - ref)) < 5e-2

    print("KERNEL_OK")
</pallas_src>

<mosaic_0001>
module attributes {stable_mosaic.version = 11 : i64} {
  func.func @_patch_embed_kernel(%arg0: i32, %arg1: memref<128x128xbf16, #tpu.memory_space<vmem>>, %arg2: memref<128x128xbf16, #tpu.memory_space<vmem>>, %arg3: memref<3x128xf32, #tpu.memory_space<vmem>>, %arg4: memref<128x128xf32, #tpu.memory_space<vmem>>) attributes {dimension_semantics = [#tpu.dimension_semantics<parallel>], iteration_bounds = array<i64: 1>, scalar_prefetch = 0 : i64, scratch_operands = 0 : i64, tpu.core_type = #tpu.core_type<tc>, window_params = [{transform_indices = @transform_0, window_bounds = array<i64: 128, 128>}, {pipeline_mode = #tpu.pipeline_mode<synchronous>, transform_indices = @transform_1, window_bounds = array<i64: 128, 128>}, {pipeline_mode = #tpu.pipeline_mode<synchronous>, transform_indices = @transform_2, window_bounds = array<i64: 3, 128>}, {transform_indices = @transform_3, window_bounds = array<i64: 128, 128>}]} {
    %c0 = arith.constant 0 : index
    %c0_0 = arith.constant 0 : index
    %0 = vector.load %arg1[%c0, %c0_0] : memref<128x128xbf16, #tpu.memory_space<vmem>>, vector<128x128xbf16>
    %c0_1 = arith.constant 0 : index
    %c0_2 = arith.constant 0 : index
    %1 = vector.load %arg2[%c0_1, %c0_2] : memref<128x128xbf16, #tpu.memory_space<vmem>>, vector<128x128xbf16>
    %cst = arith.constant dense<0.000000e+00> : vector<128x128xf32>
    %2 = tpu.matmul %0, %1, %cst {dimension_numbers = #tpu.dot_dimension_numbers<[1], [0], [0], [1], [0, 0, 1, 1], [], []>} : vector<128x128xbf16>, vector<128x128xbf16>, vector<128x128xf32> -> vector<128x128xf32>
    %c0_3 = arith.constant 0 : index
    %c0_4 = arith.constant 0 : index
    %3 = vector.load %arg3[%c0_3, %c0_4] : memref<3x128xf32, #tpu.memory_space<vmem>>, vector<1x128xf32>
    %4 = vector.broadcast %3 : vector<1x128xf32> to vector<128x128xf32>
    %5 = arith.addf %2, %4 : vector<128x128xf32>
    %cst_5 = arith.constant dense<0.000000e+00> : vector<128xf32>
    %6 = vector.multi_reduction <add>, %5, %cst_5 [1] : vector<128x128xf32> to vector<128xf32>
    %7 = vector.shape_cast %6 : vector<128xf32> to vector<128x1xf32>
    %cst_6 = arith.constant 3.125000e-02 : f32
    %8 = vector.broadcast %cst_6 : f32 to vector<128x1xf32>
    %9 = arith.mulf %7, %8 : vector<128x1xf32>
    %10 = vector.broadcast %9 : vector<128x1xf32> to vector<128x128xf32>
    %11 = arith.subf %5, %10 : vector<128x128xf32>
    %12 = tpu.iota {dimensions = array<i32: 1>} : vector<128x128xi32>
    %c32_i32 = arith.constant 32 : i32
    %13 = vector.broadcast %c32_i32 : i32 to vector<128x128xi32>
    %14 = arith.cmpi slt, %12, %13 : vector<128x128xi32>
    %15 = arith.extui %14 : vector<128x128xi1> to vector<128x128xi32>
    %16 = arith.sitofp %15 : vector<128x128xi32> to vector<128x128xf32>
    %17 = arith.mulf %11, %11 : vector<128x128xf32>
    %18 = arith.mulf %17, %16 : vector<128x128xf32>
    %cst_7 = arith.constant dense<0.000000e+00> : vector<128xf32>
    %19 = vector.multi_reduction <add>, %18, %cst_7 [1] : vector<128x128xf32> to vector<128xf32>
    %20 = vector.shape_cast %19 : vector<128xf32> to vector<128x1xf32>
    %cst_8 = arith.constant 3.125000e-02 : f32
    %21 = vector.broadcast %cst_8 : f32 to vector<128x1xf32>
    %22 = arith.mulf %20, %21 : vector<128x1xf32>
    %cst_9 = arith.constant 9.99999974E-6 : f32
    %23 = vector.broadcast %cst_9 : f32 to vector<128x1xf32>
    %24 = arith.addf %22, %23 : vector<128x1xf32>
    %25 = math.rsqrt %24 : vector<128x1xf32>
    %26 = vector.broadcast %25 : vector<128x1xf32> to vector<128x128xf32>
    %27 = arith.mulf %11, %26 : vector<128x128xf32>
    %c1 = arith.constant 1 : index
    %c0_10 = arith.constant 0 : index
    %28 = vector.load %arg3[%c1, %c0_10] : memref<3x128xf32, #tpu.memory_space<vmem>>, vector<1x128xf32>
    %29 = vector.broadcast %28 : vector<1x128xf32> to vector<128x128xf32>
    %30 = arith.mulf %27, %29 : vector<128x128xf32>
    %c2 = arith.constant 2 : index
    %c0_11 = arith.constant 0 : index
    %31 = vector.load %arg3[%c2, %c0_11] : memref<3x128xf32, #tpu.memory_space<vmem>>, vector<1x128xf32>
    %32 = vector.broadcast %31 : vector<1x128xf32> to vector<128x128xf32>
    %33 = arith.addf %30, %32 : vector<128x128xf32>
    %c0_12 = arith.constant 0 : index
    %c0_13 = arith.constant 0 : index
    %34 = vector.load %arg4[%c0_12, %c0_13] : memref<128x128xf32, #tpu.memory_space<vmem>>, vector<128x128xf32>
    tpu.vector_store %arg4[%c0_12, %c0_13], %33 {strides = array<i32>} : memref<128x128xf32, #tpu.memory_space<vmem>>, vector<128x128xf32>,
    return
  }
  func.func @transform_0(%arg0: i32) -> (i32, i32) {
    %c0_i32 = arith.constant 0 : i32
    %c0_i32_0 = arith.constant 0 : i32
    return %arg0, %c0_i32 : i32, i32
  }
  func.func @transform_1(%arg0: i32) -> (i32, i32) {
    %c0_i32 = arith.constant 0 : i32
    %c0_i32_0 = arith.constant 0 : i32
    %c0_i32_1 = arith.constant 0 : i32
    return %c0_i32, %c0_i32_0 : i32, i32
  }
  func.func @transform_2(%arg0: i32) -> (i32, i32) {
    %c0_i32 = arith.constant 0 : i32
    %c0_i32_0 = arith.constant 0 : i32
    %c0_i32_1 = arith.constant 0 : i32
    return %c0_i32, %c0_i32_0 : i32, i32
  }
  func.func @transform_3(%arg0: i32) -> (i32, i32) {
    %c0_i32 = arith.constant 0 : i32
    %c0_i32_0 = arith.constant 0 : i32
    return %arg0, %c0_i32 : i32, i32
  }
}

</mosaic_0001>

<llo_original>
// kernel: overlap_patch_embed.1
$region0: #{overlap_patch_embed.1}
  #allocation0 [shape = 'u32[]', space=smem, size = 0x4, offset = 0x4, fixed_abs, tag = 'smem constant byte address 0x4 - core index']
  #allocation1 [shape = 'u32[144,128]{1,0:T(1,128)}', space=vmem, size = 0x12000, scoped, tag = 'internal scratch']
  %s0 = inlined_call_operand.vmem [shape: bf16[128,128], index: 0, kind: input, shape index: {}]
  %s1 = inlined_call_operand.vmem [shape: bf16[128,128], index: 1, kind: input, shape index: {}]
  %s2 = inlined_call_operand.vmem [shape: f32[3,128], index: 2, kind: input, shape index: {}]
  %s3 = inlined_call_operand.vmem [shape: f32[128,128], index: 3, kind: output, shape index: {}]
  %s4 = sld [smem:[#allocation0]]
  $region22: #{overlap_patch_embed.1} parent=0
    _
  %s6 = ssub.s32 1, %s4
  %s7 = scalar_select 0, %s6, %s4
  // Predicated region
  $region2: #{overlap_patch_embed.1} parent=0 // pred_check
    _
  $region3: #{overlap_patch_embed.1} parent=0 // pred_check_branch
    %9 = sbr.rel (0) target = $region5
  $region4: #{overlap_patch_embed.1} parent=0 // pred_region
    _
  $region5: #{overlap_patch_embed.1} parent=0 // pred_fallthru
    _
  // Predicated region
  $region6: #{overlap_patch_embed.1} parent=0 // pred_check
    _
  $region7: #{overlap_patch_embed.1} parent=0 // pred_check_branch
    %11 = sbr.rel (0) target = $region9
  $region8: #{overlap_patch_embed.1} parent=0 // pred_region
    _
  $region9: #{overlap_patch_embed.1} parent=0 // pred_fallthru
    _
  // Predicated region
  $region10: #{overlap_patch_embed.1} parent=0 // pred_check
    _
  $region11: #{overlap_patch_embed.1} parent=0 // pred_check_branch
    %13 = sbr.rel (0) target = $region13
  $region12: #{overlap_patch_embed.1} parent=0 // pred_region
    _
  $region13: #{overlap_patch_embed.1} parent=0 // pred_fallthru
    _
  %v15 = vld [vmem:[%s0] sm:$0xf]
  %v16 = vld [vmem:[%s0 + $0x4] sm:$0xf]
  %v17 = vld [vmem:[%s0 + $0x8] sm:$0xf]
  %v18 = vld [vmem:[%s0 + $0xc] sm:$0xf]
  %v19 = vld [vmem:[%s0 + $0x10] sm:$0xf]
  %v20 = vld [vmem:[%s0 + $0x14] sm:$0xf]
  %v21 = vld [vmem:[%s0 + $0x18] sm:$0xf]
  %v22 = vld [vmem:[%s0 + $0x1c] sm:$0xf]
  %v23 = vld [vmem:[%s0 + $0x20] sm:$0xf]
  %v24 = vld [vmem:[%s0 + $0x24] sm:$0xf]
  %v25 = vld [vmem:[%s0 + $0x28] sm:$0xf]
  %v26 = vld [vmem:[%s0 + $0x2c] sm:$0xf]
  %v27 = vld [vmem:[%s0 + $0x30] sm:$0xf]
  %v28 = vld [vmem:[%s0 + $0x34] sm:$0xf]
  %v29 = vld [vmem:[%s0 + $0x38] sm:$0xf]
  %v30 = vld [vmem:[%s0 + $0x3c] sm:$0xf]
  %v31 = vld [vmem:[%s1] sm:$0xf]
  %v32 = vld [vmem:[%s1 + $0x4] sm:$0xf]
  %v33 = vld [vmem:[%s1 + $0x8] sm:$0xf]
  %v34 = vld [vmem:[%s1 + $0xc] sm:$0xf]
  %v35 = vld [vmem:[%s1 + $0x10] sm:$0xf]
  %v36 = vld [vmem:[%s1 + $0x14] sm:$0xf]
  %v37 = vld [vmem:[%s1 + $0x18] sm:$0xf]
  %v38 = vld [vmem:[%s1 + $0x1c] sm:$0xf]
  %v39 = vld [vmem:[%s1 + $0x20] sm:$0xf]
  %v40 = vld [vmem:[%s1 + $0x24] sm:$0xf]
  %v41 = vld [vmem:[%s1 + $0x28] sm:$0xf]
  %v42 = vld [vmem:[%s1 + $0x2c] sm:$0xf]
  %v43 = vld [vmem:[%s1 + $0x30] sm:$0xf]
  %v44 = vld [vmem:[%s1 + $0x34] sm:$0xf]
  %v45 = vld [vmem:[%s1 + $0x38] sm:$0xf]
  %v46 = vld [vmem:[%s1 + $0x3c] sm:$0xf]
  %v47 = vld [vmem:[%s2] sm:$0x1]
  %v48 = vlaneseq
  %v49 = vshrl.u32 %v48, 7
  %v50 = vsub.s32 0, %v49
  %v51 = vrot.slane %v47, %v50
  %v68 = vunpack.c.l.b16 %v15
  %v69 = vunpack.c.l.b16 %v16
  %v70 = vunpack.c.l.b16 %v17
  %v71 = vunpack.c.l.b16 %v18
  %v72 = vunpack.c.l.b16 %v19
  %v73 = vunpack.c.l.b16 %v20
  %v74 = vunpack.c.l.b16 %v21
  %v75 = vunpack.c.l.b16 %v22
  %v76 = vunpack.c.l.b16 %v23
  %v77 = vunpack.c.l.b16 %v24
  %v78 = vunpack.c.l.b16 %v25
  %v79 = vunpack.c.l.b16 %v26
  %v80 = vunpack.c.l.b16 %v27
  %v81 = vunpack.c.l.b16 %v28
  %v82 = vunpack.c.l.b16 %v29
  %v83 = vunpack.c.l.b16 %v30
  %v84 = vpack.c.b16 %v69, %v68
  %v85 = vpack.c.b16 %v71, %v70
  %v86 = vpack.c.b16 %v73, %v72
  %v87 = vpack.c.b16 %v75, %v74
  %v88 = vpack.c.b16 %v77, %v76
  %v89 = vpack.c.b16 %v79, %v78
  %v90 = vpack.c.b16 %v81, %v80
  %v91 = vpack.c.b16 %v83, %v82
  %v116 = vunpack.c.l.b16 %v31
  %v117 = vunpack.c.l.b16 %v32
  %v118 = vunpack.c.l.b16 %v33
  %v119 = vunpack.c.l.b16 %v34
  %v120 = vunpack.c.l.b16 %v35
  %v121 = vunpack.c.l.b16 %v36
  %v122 = vunpack.c.l.b16 %v37
  %v123 = vunpack.c.l.b16 %v38
  %v124 = vunpack.c.l.b16 %v39
  %v125 = vunpack.c.l.b16 %v40
  %v126 = vunpack.c.l.b16 %v41
  %v127 = vunpack.c.l.b16 %v42
  %v128 = vunpack.c.l.b16 %v43
  %v129 = vunpack.c.l.b16 %v44
  %v130 = vunpack.c.l.b16 %v45
  %v131 = vunpack.c.l.b16 %v46
  %v132 = vpack.c.b16 %v117, %v116
  %v133 = vpack.c.b16 %v119, %v118
  %v134 = vpack.c.b16 %v121, %v120
  %v135 = vpack.c.b16 %v123, %v122
  %v136 = vpack.c.b16 %v125, %v124
  %v137 = vpack.c.b16 %v127, %v126
  %v138 = vpack.c.b16 %v129, %v128
  %v139 = vpack.c.b16 %v131, %v130
  %148 = vmatprep.subr.bf16.mxu0 0
  %149 = vmatpush1.bf16.msra.mxu0 %v132
  %150 = vmatprep.subr.bf16.mxu0 0
  %151 = vmatpush1.bf16.msra.mxu0 %v133
  %152 = vmatprep.subr.bf16.mxu0 0
  %153 = vmatpush1.bf16.msra.mxu0 %v134
  %154 = vmatprep.subr.bf16.mxu0 0
  %155 = vmatpush1.bf16.msra.mxu0 %v135
  %156 = vmatprep.subr.bf16.mxu0 0
  %157 = vmatpush1.bf16.msra.mxu0 %v136
  %158 = vmatprep.subr.bf16.mxu0 0
  %159 = vmatpush1.bf16.msra.mxu0 %v137
  %160 = vmatprep.subr.bf16.mxu0 0
  %161 = vmatpush1.bf16.msra.mxu0 %v138
  %162 = vmatprep.subr.bf16.mxu0 0
  %163 = vmatpush1.bf16.msra.mxu0 %v139
  %164 = vmatprep.subr.bf16.mxu0 0
  %165 = vmatpush1.bf16.msra.mxu0 0
  %166 = vmatprep.subr.bf16.mxu0 0
  %167 = vmatpush1.bf16.msra.mxu0 0
  %168 = vmatprep.subr.bf16.mxu0 0
  %169 = vmatpush1.bf16.msra.mxu0 0
  %170 = vmatprep.subr.bf16.mxu0 0
  %171 = vmatpush1.bf16.msra.mxu0 0
  %172 = vmatprep.subr.bf16.mxu0 0
  %173 = vmatpush1.bf16.msra.mxu0 0
  %174 = vmatprep.subr.bf16.mxu0 0
  %175 = vmatpush1.bf16.msra.mxu0 0
  %176 = vmatprep.subr.bf16.mxu0 0
  %177 = vmatpush1.bf16.msra.mxu0 0
  %178 = vmatprep.subr.bf16.mxu0 0
  %179 = vmatpush1.bf16.msra.mxu0 0
  %180 = vmatprep.mubr.bf16.mxu0 0
  %181 = vmatmul.mubr.bf16.gmra.mrb[0].mxu0 %v84
  %v182 = vpop.f32.mrb[0].mxu0
  %v183 = vadd.f32 %v51, %v182
  %v184 = vpop.f32.mrb[0].mxu0
  %v185 = vpop.f32.mrb[0].mxu0
  %v186 = vadd.f32 %v51, %v185
  %v187 = vpop.f32.mrb[0].mxu0
  %188 = vmatprep.mubr.bf16.mxu0 0
  %189 = vmatmul.mubr.bf16.gmra.mrb[0].mxu0 %v85
  %v190 = vpop.f32.mrb[0].mxu0
  %v191 = vadd.f32 %v51, %v190
  %v192 = vpop.f32.mrb[0].mxu0
  %v193 = vpop.f32.mrb[0].mxu0
  %v194 = vadd.f32 %v51, %v193
  %v195 = vpop.f32.mrb[0].mxu0
  %196 = vmatprep.mubr.bf16.mxu0 0
  %197 = vmatmul.mubr.bf16.gmra.mrb[0].mxu0 %v86
  %v198 = vpop.f32.mrb[0].mxu0
  %v199 = vadd.f32 %v51, %v198
  %v200 = vpop.f32.mrb[0].mxu0
  %v201 = vpop.f32.mrb[0].mxu0
  %v202 = vadd.f32 %v51, %v201
  %v203 = vpop.f32.mrb[0].mxu0
  %204 = vmatprep.mubr.bf16.mxu0 0
  %205 = vmatmul.mubr.bf16.gmra.mrb[0].mxu0 %v87
  %v206 = vpop.f32.mrb[0].mxu0
  %v207 = vadd.f32 %v51, %v206
  %v208 = vpop.f32.mrb[0].mxu0
  %v209 = vpop.f32.mrb[0].mxu0
  %v210 = vadd.f32 %v51, %v209
  %v211 = vpop.f32.mrb[0].mxu0
  %212 = vmatprep.mubr.bf16.mxu0 0
  %213 = vmatmul.mubr.bf16.gmra.mrb[0].mxu0 %v88
  %v214 = vpop.f32.mrb[0].mxu0
  %v215 = vadd.f32 %v51, %v214
  %v216 = vpop.f32.mrb[0].mxu0
  %v217 = vpop.f32.mrb[0].mxu0
  %v218 = vadd.f32 %v51, %v217
  %v219 = vpop.f32.mrb[0].mxu0
  %220 = vmatprep.mubr.bf16.mxu0 0
  %221 = vmatmul.mubr.bf16.gmra.mrb[0].mxu0 %v89
  %v222 = vpop.f32.mrb[0].mxu0
  %v223 = vadd.f32 %v51, %v222
  %v224 = vpop.f32.mrb[0].mxu0
  %v225 = vpop.f32.mrb[0].mxu0
  %v226 = vadd.f32 %v51, %v225
  %v227 = vpop.f32.mrb[0].mxu0
  %228 = vmatprep.mubr.bf16.mxu0 0
  %229 = vmatmul.mubr.bf16.gmra.mrb[0].mxu0 %v90
  %v230 = vpop.f32.mrb[0].mxu0
  %v231 = vadd.f32 %v51, %v230
  %v232 = vpop.f32.mrb[0].mxu0
  %v233 = vpop.f32.mrb[0].mxu0
  %v234 = vadd.f32 %v51, %v233
  %v235 = vpop.f32.mrb[0].mxu0
  %236 = vmatprep.mubr.bf16.mxu0 0
  %237 = vmatmul.mubr.bf16.gmra.mrb[0].mxu0 %v91
  %v238 = vpop.f32.mrb[0].mxu0
  %v239 = vadd.f32 %v51, %v238
  %v240 = vpop.f32.mrb[0].mxu0
  %v241 = vpop.f32.mrb[0].mxu0
  %v242 = vadd.f32 %v51, %v241
  %v243 = vpop.f32.mrb[0].mxu0
  %244 = vdwg.mxu0
  %245 = vadd.xlane.f32.xlu0 %v183
  %v246 = vpop.xlane.xlu0 %245
  %247 = vadd.xlane.f32.xlu0 %v186
  %v248 = vpop.xlane.xlu0 %247
  %249 = vadd.xlane.f32.xlu0 %v191
  %v250 = vpop.xlane.xlu0 %249
  %251 = vadd.xlane.f32.xlu0 %v194
  %v252 = vpop.xlane.xlu0 %251
  %253 = vadd.xlane.f32.xlu0 %v199
  %v254 = vpop.xlane.xlu0 %253
  %255 = vadd.xlane.f32.xlu0 %v202
  %v256 = vpop.xlane.xlu0 %255
  %257 = vadd.xlane.f32.xlu0 %v207
  %v258 = vpop.xlane.xlu0 %257
  %259 = vadd.xlane.f32.xlu0 %v210
  %v260 = vpop.xlane.xlu0 %259
  %261 = vadd.xlane.f32.xlu0 %v215
  %v262 = vpop.xlane.xlu0 %261
  %263 = vadd.xlane.f32.xlu0 %v218
  %v264 = vpop.xlane.xlu0 %263
  %265 = vadd.xlane.f32.xlu0 %v223
  %v266 = vpop.xlane.xlu0 %265
  %267 = vadd.xlane.f32.xlu0 %v226
  %v268 = vpop.xlane.xlu0 %267
  %269 = vadd.xlane.f32.xlu0 %v231
  %v270 = vpop.xlane.xlu0 %269
  %271 = vadd.xlane.f32.xlu0 %v234
  %v272 = vpop.xlane.xlu0 %271
  %273 = vadd.xlane.f32.xlu0 %v239
  %v274 = vpop.xlane.xlu0 %273
  %275 = vadd.xlane.f32.xlu0 %v242
  %v276 = vpop.xlane.xlu0 %275
  %v277 = vmul.f32 %v246, 0.03125
  %v278 = vmul.f32 %v248, 0.03125
  %v279 = vmul.f32 %v250, 0.03125
  %v280 = vmul.f32 %v252, 0.03125
  %v281 = vmul.f32 %v254, 0.03125
  %v282 = vmul.f32 %v256, 0.03125
  %v283 = vmul.f32 %v258, 0.03125
  %v284 = vmul.f32 %v260, 0.03125
  %v285 = vmul.f32 %v262, 0.03125
  %v286 = vmul.f32 %v264, 0.03125
  %v287 = vmul.f32 %v266, 0.03125
  %v288 = vmul.f32 %v268, 0.03125
  %v289 = vmul.f32 %v270, 0.03125
  %v290 = vmul.f32 %v272, 0.03125
  %v291 = vmul.f32 %v274, 0.03125
  %v292 = vmul.f32 %v276, 0.03125
  %v293 = vsub.f32 %v183, %v277
  %v294 = vsub.f32 %v186, %v278
  %v295 = vsub.f32 %v191, %v279
  %v296 = vsub.f32 %v194, %v280
  %v297 = vsub.f32 %v199, %v281
  %v298 = vsub.f32 %v202, %v282
  %v299 = vsub.f32 %v207, %v283
  %v300 = vsub.f32 %v210, %v284
  %v301 = vsub.f32 %v215, %v285
  %v302 = vsub.f32 %v218, %v286
  %v303 = vsub.f32 %v223, %v287
  %v304 = vsub.f32 %v226, %v288
  %v305 = vsub.f32 %v231, %v289
  %v306 = vsub.f32 %v234, %v290
  %v307 = vsub.f32 %v239, %v291
  %v308 = vsub.f32 %v242, %v292
  %v309 = vlaneseq
  %v310 = vand.u32 %v309, 127
  %vm311 = vcmp.lt.s32.totalorder %v310, 32
  %v312 = vsel %vm311, 1, 0
  %v313 = vcvt.s32.f32 %v312
  %v314 = vmul.f32 %v293, %v293
  %v315 = vmul.f32 %v294, %v294
  %v316 = vmul.f32 %v295, %v295
  %v317 = vmul.f32 %v296, %v296
  %v318 = vmul.f32 %v297, %v297
  %v319 = vmul.f32 %v298, %v298
  %v320 = vmul.f32 %v299, %v299
  %v321 = vmul.f32 %v300, %v300
  %v322 = vmul.f32 %v301, %v301
  %v323 = vmul.f32 %v302, %v302
  %v324 = vmul.f32 %v303, %v303
  %v325 = vmul.f32 %v304, %v304
  %v326 = vmul.f32 %v305, %v305
  %v327 = vmul.f32 %v306, %v306
  %v328 = vmul.f32 %v307, %v307
  %v329 = vmul.f32 %v308, %v308
  %v330 = vmul.f32 %v314, %v313
  %v331 = vmul.f32 %v315, %v313
  %v332 = vmul.f32 %v316, %v313
  %v333 = vmul.f32 %v317, %v313
  %v334 = vmul.f32 %v318, %v313
  %v335 = vmul.f32 %v319, %v313
  %v336 = vmul.f32 %v320, %v313
  %v337 = vmul.f32 %v321, %v313
  %v338 = vmul.f32 %v322, %v313
  %v339 = vmul.f32 %v323, %v313
  %v340 = vmul.f32 %v324, %v313
  %v341 = vmul.f32 %v325, %v313
  %v342 = vmul.f32 %v326, %v313
  %v343 = vmul.f32 %v327, %v313
  %v344 = vmul.f32 %v328, %v313
  %v345 = vmul.f32 %v329, %v313
  %346 = vadd.xlane.f32.xlu0 %v330
  %v347 = vpop.xlane.xlu0 %346
  %348 = vadd.xlane.f32.xlu0 %v331
  %v349 = vpop.xlane.xlu0 %348
  %350 = vadd.xlane.f32.xlu0 %v332
  %v351 = vpop.xlane.xlu0 %350
  %352 = vadd.xlane.f32.xlu0 %v333
  %v353 = vpop.xlane.xlu0 %352
  %354 = vadd.xlane.f32.xlu0 %v334
  %v355 = vpop.xlane.xlu0 %354
  %356 = vadd.xlane.f32.xlu0 %v335
  %v357 = vpop.xlane.xlu0 %356
  %358 = vadd.xlane.f32.xlu0 %v336
  %v359 = vpop.xlane.xlu0 %358
  %360 = vadd.xlane.f32.xlu0 %v337
  %v361 = vpop.xlane.xlu0 %360
  %362 = vadd.xlane.f32.xlu0 %v338
  %v363 = vpop.xlane.xlu0 %362
  %364 = vadd.xlane.f32.xlu0 %v339
  %v365 = vpop.xlane.xlu0 %364
  %366 = vadd.xlane.f32.xlu0 %v340
  %v367 = vpop.xlane.xlu0 %366
  %368 = vadd.xlane.f32.xlu0 %v341
  %v369 = vpop.xlane.xlu0 %368
  %370 = vadd.xlane.f32.xlu0 %v342
  %v371 = vpop.xlane.xlu0 %370
  %372 = vadd.xlane.f32.xlu0 %v343
  %v373 = vpop.xlane.xlu0 %372
  %374 = vadd.xlane.f32.xlu0 %v344
  %v375 = vpop.xlane.xlu0 %374
  %376 = vadd.xlane.f32.xlu0 %v345
  %v377 = vpop.xlane.xlu0 %376
  %v378 = vmul.f32 %v347, 0.03125
  %v379 = vmul.f32 %v349, 0.03125
  %v380 = vmul.f32 %v351, 0.03125
  %v381 = vmul.f32 %v353, 0.03125
  %v382 = vmul.f32 %v355, 0.03125
  %v383 = vmul.f32 %v357, 0.03125
  %v384 = vmul.f32 %v359, 0.03125
  %v385 = vmul.f32 %v361, 0.03125
  %v386 = vmul.f32 %v363, 0.03125
  %v387 = vmul.f32 %v365, 0.03125
  %v388 = vmul.f32 %v367, 0.03125
  %v389 = vmul.f32 %v369, 0.03125
  %v390 = vmul.f32 %v371, 0.03125
  %v391 = vmul.f32 %v373, 0.03125
  %v392 = vmul.f32 %v375, 0.03125
  %v393 = vmul.f32 %v377, 0.03125
  %v394 = vadd.f32 %v378, 1e-05
  %v395 = vadd.f32 %v379, 1e-05
  %v396 = vadd.f32 %v380, 1e-05
  %v397 = vadd.f32 %v381, 1e-05
  %v398 = vadd.f32 %v382, 1e-05
  %v399 = vadd.f32 %v383, 1e-05
  %v400 = vadd.f32 %v384, 1e-05
  %v401 = vadd.f32 %v385, 1e-05
  %v402 = vadd.f32 %v386, 1e-05
  %v403 = vadd.f32 %v387, 1e-05
  %v404 = vadd.f32 %v388, 1e-05
  %v405 = vadd.f32 %v389, 1e-05
  %v406 = vadd.f32 %v390, 1e-05
  %v407 = vadd.f32 %v391, 1e-05
  %v408 = vadd.f32 %v392, 1e-05
  %v409 = vadd.f32 %v393, 1e-05
  %v410 = vrsqrt.pop %v394
  %v411 = vrsqrt.pop %v395
  %v412 = vrsqrt.pop %v396
  %v413 = vrsqrt.pop %v397
  %v414 = vrsqrt.pop %v398
  %v415 = vrsqrt.pop %v399
  %v416 = vrsqrt.pop %v400
  %v417 = vrsqrt.pop %v401
  %v418 = vrsqrt.pop %v402
  %v419 = vrsqrt.pop %v403
  %v420 = vrsqrt.pop %v404
  %v421 = vrsqrt.pop %v405
  %v422 = vrsqrt.pop %v406
  %v423 = vrsqrt.pop %v407
  %v424 = vrsqrt.pop %v408
  %v425 = vrsqrt.pop %v409
  %v426 = vmul.f32 %v293, %v410
  %v427 = vmul.f32 %v294, %v411
  %v428 = vmul.f32 %v295, %v412
  %v429 = vmul.f32 %v296, %v413
  %v430 = vmul.f32 %v297, %v414
  %v431 = vmul.f32 %v298, %v415
  %v432 = vmul.f32 %v299, %v416
  %v433 = vmul.f32 %v300, %v417
  %v434 = vmul.f32 %v301, %v418
  %v435 = vmul.f32 %v302, %v419
  %v436 = vmul.f32 %v303, %v420
  %v437 = vmul.f32 %v304, %v421
  %v438 = vmul.f32 %v305, %v422
  %v439 = vmul.f32 %v306, %v423
  %v440 = vmul.f32 %v307, %v424
  %v441 = vmul.f32 %v308, %v425
  %v442 = vld [vmem:[%s2 + $0x1] sm:$0x1]
  %v443 = vlaneseq
  %v444 = vshrl.u32 %v443, 7
  %v445 = vsub.s32 0, %v444
  %v446 = vrot.slane %v442, %v445
  %v447 = vmul.f32 %v426, %v446
  %v448 = vmul.f32 %v427, %v446
  %v449 = vmul.f32 %v428, %v446
  %v450 = vmul.f32 %v429, %v446
  %v451 = vmul.f32 %v430, %v446
  %v452 = vmul.f32 %v431, %v446
  %v453 = vmul.f32 %v432, %v446
  %v454 = vmul.f32 %v433, %v446
  %v455 = vmul.f32 %v434, %v446
  %v456 = vmul.f32 %v435, %v446
  %v457 = vmul.f32 %v436, %v446
  %v458 = vmul.f32 %v437, %v446
  %v459 = vmul.f32 %v438, %v446
  %v460 = vmul.f32 %v439, %v446
  %v461 = vmul.f32 %v440, %v446
  %v462 = vmul.f32 %v441, %v446
  %v463 = vld [vmem:[%s2 + $0x2] sm:$0x1]
  %v464 = vlaneseq
  %v465 = vshrl.u32 %v464, 7
  %v466 = vsub.s32 0, %v465
  %v467 = vrot.slane %v463, %v466
  %v468 = vadd.f32 %v447, %v467
  %v469 = vadd.f32 %v448, %v467
  %v470 = vadd.f32 %v449, %v467
  %v471 = vadd.f32 %v450, %v467
  %v472 = vadd.f32 %v451, %v467
  %v473 = vadd.f32 %v452, %v467
  %v474 = vadd.f32 %v453, %v467
  %v475 = vadd.f32 %v454, %v467
  %v476 = vadd.f32 %v455, %v467
  %v477 = vadd.f32 %v456, %v467
  %v478 = vadd.f32 %v457, %v467
  %v479 = vadd.f32 %v458, %v467
  %v480 = vadd.f32 %v459, %v467
  %v481 = vadd.f32 %v460, %v467
  %v482 = vadd.f32 %v461, %v467
  %v483 = vadd.f32 %v462, %v467
  %484 = vst [vmem:[%s3] sm:$0xff] %v468
  %485 = vst [vmem:[%s3 + $0x8] sm:$0xff] %v469
  %486 = vst [vmem:[%s3 + $0x10] sm:$0xff] %v470
  %487 = vst [vmem:[%s3 + $0x18] sm:$0xff] %v471
  %488 = vst [vmem:[%s3 + $0x20] sm:$0xff] %v472
  %489 = vst [vmem:[%s3 + $0x28] sm:$0xff] %v473
  %490 = vst [vmem:[%s3 + $0x30] sm:$0xff] %v474
  %491 = vst [vmem:[%s3 + $0x38] sm:$0xff] %v475
  %492 = vst [vmem:[%s3 + $0x40] sm:$0xff] %v476
  %493 = vst [vmem:[%s3 + $0x48] sm:$0xff] %v477
  %494 = vst [vmem:[%s3 + $0x50] sm:$0xff] %v478
  %495 = vst [vmem:[%s3 + $0x58] sm:$0xff] %v479
  %496 = vst [vmem:[%s3 + $0x60] sm:$0xff] %v480
  %497 = vst [vmem:[%s3 + $0x68] sm:$0xff] %v481
  %498 = vst [vmem:[%s3 + $0x70] sm:$0xff] %v482
  %499 = vst [vmem:[%s3 + $0x78] sm:$0xff] %v483
  // Predicated region
  $region14: #{overlap_patch_embed.1} parent=0 // pred_check
    _
  $region15: #{overlap_patch_embed.1} parent=0 // pred_check_branch
    %501 = sbr.rel (0) target = $region17
  $region16: #{overlap_patch_embed.1} parent=0 // pred_region
    _
  $region17: #{overlap_patch_embed.1} parent=0 // pred_fallthru
    _
  // Predicated region
  $region18: #{overlap_patch_embed.1} parent=0 // pred_check
    _
  $region19: #{overlap_patch_embed.1} parent=0 // pred_check_branch
    %503 = sbr.rel (0) target = $region21
  $region20: #{overlap_patch_embed.1} parent=0 // pred_region
    _
  $region21: #{overlap_patch_embed.1} parent=0 // pred_fallthru
    _

</llo_original>
